<compile_context>
chip_gen: v6e
topology: v6e:2x2x1
jax: 0.10.0
libtpu: 0.0.40
codegen_flags: <defaults>
</compile_context>

<pallas_src>
import math

import jax
import jax.numpy as jnp
from jax import lax
from jax.experimental import pallas as pl
from jax.experimental.pallas import tpu as pltpu

# ---------------- config (small MiniCPM-like layer) ----------------
B, S, H = 2, 8, 128          # batch, seq, hidden
NH, HD = 4, 32               # heads, head_dim (MHA: kv heads == heads)
I = 256                      # MLP intermediate size
BS = B * S                   # flattened rows
HALF = HD // 2
EPS = 1e-5                   # RMSNorm eps
NUM_LAYERS = 4
SCALE_DEPTH = 1.4
RES_SCALE = SCALE_DEPTH / math.sqrt(NUM_LAYERS)   # MiniCPM depth-scaled residual
ROPE_BASE = 10000.0
ATT_SCALE = 1.0 / math.sqrt(HD)


def _rms_norm(x, w):
    var = jnp.mean(x * x, axis=-1, keepdims=True)
    return x * jax.lax.rsqrt(var + EPS) * w


def _rotate_half(x):
    half = x.shape[-1] // 2
    return jnp.concatenate([-x[:, half:], x[:, :half]], axis=-1)


# ---------------- Pallas kernel: whole (B*S, H) problem, one invocation ----------------
def block_kernel(x_ref, maskb_ref, cos_ref, sina_ref, sinb_ref,
                 hm_ref, bmat_ref,
                 wqkv_ref, wo_ref, wgu_ref, wd_ref,
                 out_ref, k_ref, v_ref):
    x = x_ref[...]                      # (BS, H)       f32
    cos = cos_ref[...]                  # (BS, H)       f32 per-head tiled
    sin_a = sina_ref[...]               # (BS, H)       f32 (sign + roll-A lanes)
    sin_b = sinb_ref[...]               # (BS, H)       f32 (sign + roll-B lanes)

    # ---- RMSNorm (gain folded into wqkv) + fused QKV projection on the MXU ----
    var = jnp.mean(x * x, axis=-1, keepdims=True)
    xn = x * jax.lax.rsqrt(var + EPS)
    qkv = jnp.dot(xn.astype(jnp.bfloat16), wqkv_ref[...],
                  preferred_element_type=jnp.float32)           # (BS, 3H)
    q = qkv[:, :H]                       # already * ATT_SCALE (folded into wqkv)
    k = qkv[:, H:2 * H]
    v = qkv[:, 2 * H:]

    # ---- RoPE on full 128-lane q/k: two XLU rolls with precomputed sin tables ----
    def rope(t):
        return (t * cos
                + pltpu.roll(t, HALF, axis=1) * sin_a
                + pltpu.roll(t, H - HALF, axis=1) * sin_b)

    q = rope(q)
    k = rope(k)

    # ---- lane-dense bf16 KV-cache writeback (reshaped to (B,NH,S,HD) outside) ----
    k_ref[...] = k.astype(jnp.bfloat16)
    v_ref[...] = v.astype(jnp.bfloat16)

    # ---- attention without per-head relayouts ----
    # K_big/V_big: (NH*BS, H) where row h*BS+j holds k/v row j masked to head h's
    # 32 lanes.  Contracting full-H q against K_big gives per-head scores laid
    # out lane-dense as (BS, NH*BS); PV against V_big gives ctx directly in the
    # (BS, H) head-concatenated layout needed by the o-projection.
    hm = hm_ref[...]                                            # (NH, H) 0/1 head masks
    k_big = (hm[:, None, :] * k[None, :, :]).reshape(NH * BS, H).astype(jnp.bfloat16)
    v_big = (hm[:, None, :] * v[None, :, :]).reshape(NH * BS, H).astype(jnp.bfloat16)

    s = lax.dot_general(q.astype(jnp.bfloat16), k_big,
                        (((1,), (1,)), ((), ())),
                        preferred_element_type=jnp.float32)     # (BS, NH*BS)
    s = s + maskb_ref[...]                                      # block-diag causal mask, tiled per head
    s = s - jnp.max(s, axis=-1, keepdims=True)                  # row max (softmax shift-invariant)
    e = jnp.exp(s)
    # per-head denominators broadcast back to lanes via block-diagonal ones matmul
    denom = jnp.dot(e, bmat_ref[...], preferred_element_type=jnp.float32)
    p = e * pl.reciprocal(denom, approx=True)
    ctx = jnp.dot(p.astype(jnp.bfloat16), v_big,
                  preferred_element_type=jnp.float32)           # (BS, H) head-concat layout

    # o-projection: single K=128 matmul (RES_SCALE folded into wo)
    x = x + jnp.dot(ctx.astype(jnp.bfloat16), wo_ref[...],
                    preferred_element_type=jnp.float32)

    # ---- fused SiLU-gated MLP (ln2 folded into wgu, RES_SCALE into wd) ----
    var2 = jnp.mean(x * x, axis=-1, keepdims=True)
    xn2 = x * jax.lax.rsqrt(var2 + EPS)
    gu = jnp.dot(xn2.astype(jnp.bfloat16), wgu_ref[...],
                 preferred_element_type=jnp.float32)            # (BS, 2I)
    g = gu[:, :I]
    u = gu[:, I:]
    act = (g * jax.nn.sigmoid(g)) * u
    out_ref[...] = x + jnp.dot(act.astype(jnp.bfloat16), wd_ref[...],
                               preferred_element_type=jnp.float32)


# ---------------- one-time load-time preparation ----------------
def _roll_source_map():
    """Probe pltpu.roll's direction once: src[c] = input lane feeding output lane c
    for pltpu.roll(x, HALF, axis=1) on a 128-lane axis."""
    lane = jnp.tile(jnp.arange(H, dtype=jnp.int32)[None, :], (8, 1))

    def probe(x_ref, o_ref):
        o_ref[...] = pltpu.roll(x_ref[...], HALF, axis=1)

    rolled = pl.pallas_call(
        probe, out_shape=jax.ShapeDtypeStruct((8, H), jnp.int32))(lane)
    return rolled[0]                                            # (H,)


def prepare(params, attention_mask, cos, sin):
    """Fuse weights / fold constants / build masks and RoPE tables once."""
    # --- fused weights (ln gains folded into rows, ATT_SCALE into q columns,
    #     RES_SCALE into wo/wd), bf16 for the MXU ---
    ln1 = params["ln1"].reshape(H, 1)
    ln2 = params["ln2"].reshape(H, 1)
    wqkv = (ln1 * jnp.concatenate(
        [params["wq"] * ATT_SCALE, params["wk"], params["wv"]], axis=1)
            ).astype(jnp.bfloat16)                              # (H, 3H)
    wo = (params["wo"] * RES_SCALE).astype(jnp.bfloat16)        # (H, H)
    wgu = (ln2 * jnp.concatenate([params["wg"], params["wu"]], axis=1)
           ).astype(jnp.bfloat16)                               # (H, 2I)
    wd = (params["wd"] * RES_SCALE).astype(jnp.bfloat16)        # (I, H)

    # --- block-diagonal additive mask over flattened (batch*seq), tiled per head ---
    rb = jnp.repeat(jnp.arange(B), S)                           # (BS,) batch id
    pos = jnp.tile(jnp.arange(S), B)                            # (BS,) seq position
    inner = attention_mask[rb[:, None], pos[:, None], pos[None, :]]
    big = jnp.where(rb[:, None] == rb[None, :], inner, -1e9).astype(jnp.float32)
    mask_big = jnp.tile(big, (1, NH))                           # (BS, NH*BS)

    # --- head masks + block-diagonal ones (per-head softmax denominators) ---
    hm = (jnp.arange(H)[None, :] // HD == jnp.arange(NH)[:, None]
          ).astype(jnp.float32)                                 # (NH, H)
    hb = jnp.repeat(jnp.arange(NH), BS)
    bmat = (hb[:, None] == hb[None, :]).astype(jnp.float32)     # (NH*BS, NH*BS)

    # --- RoPE tables: per-head tiled, rotate_half sign folded into sin, split
    #     into the two roll directions using the probed roll convention ---
    cos_flat = cos.reshape(BS, HD)
    sin_flat = sin.reshape(BS, HD)
    sgn = jnp.where(jnp.arange(HD) < HALF, -1.0, 1.0).astype(jnp.float32)
    cos_full = jnp.tile(cos_flat, (1, NH))                      # (BS, H)
    sin_full = jnp.tile(sin_flat * sgn, (1, NH))                # (BS, H)

    src_a = _roll_source_map()                                  # (H,)
    lanes = jnp.arange(H)
    partner = jnp.where((lanes % HD) < HALF, lanes + HALF, lanes - HALF)
    take_a = (src_a == partner).astype(jnp.float32)             # (H,)
    sin_a = sin_full * take_a[None, :]
    sin_b = sin_full * (1.0 - take_a)[None, :]

    return dict(wqkv=wqkv, wo=wo, wgu=wgu, wd=wd,
                mask_big=mask_big, hm=hm, bmat=bmat,
                cos=cos_full, sin_a=sin_a, sin_b=sin_b)


# ---------------- thin per-call wrapper ----------------
@jax.jit
def minicpm_block(hidden, prep):
    x_flat = hidden.reshape(BS, H).astype(jnp.float32)
    out_shape = (
        jax.ShapeDtypeStruct((BS, H), jnp.float32),    # hidden out (flattened)
        jax.ShapeDtypeStruct((BS, H), jnp.bfloat16),   # post-RoPE K, lane-dense
        jax.ShapeDtypeStruct((BS, H), jnp.bfloat16),   # V, lane-dense
    )
    # Gridless call: whole problem + fused weights are VMEM-resident for the
    # single invocation (no per-grid-step overhead, weights fetched exactly once).
    out_flat, k_flat, v_flat = pl.pallas_call(
        block_kernel, out_shape=out_shape,
    )(x_flat, prep["mask_big"], prep["cos"], prep["sin_a"], prep["sin_b"],
      prep["hm"], prep["bmat"],
      prep["wqkv"], prep["wo"], prep["wgu"], prep["wd"])

    out = out_flat.reshape(B, S, H)
    past_k = k_flat.reshape(B, S, NH, HD).transpose(0, 2, 1, 3)   # (B, NH, S, HD)
    past_v = v_flat.reshape(B, S, NH, HD).transpose(0, 2, 1, 3)
    return out, past_k, past_v


# ---------------- pure-JAX reference (spec semantics, bf16 matmul cast points) ----------------
def reference_block(hidden, mask, cos, sin, p):
    bf = lambda a: a.astype(jnp.bfloat16)
    dot = lambda a, b: jnp.dot(bf(a), bf(b), preferred_element_type=jnp.float32)
    outs, pks, pvs = [], [], []
    for b in range(B):
        x = hidden[b]
        xn = _rms_norm(x, p["ln1"])
        q = dot(xn, p["wq"]); k = dot(xn, p["wk"]); v = dot(xn, p["wv"])
        heads, kh_all, vh_all = [], [], []
        for h in range(NH):
            lo, hi = h * HD, (h + 1) * HD
            qh, kh, vh = q[:, lo:hi], k[:, lo:hi], v[:, lo:hi]
            qh = qh * cos[b] + _rotate_half(qh) * sin[b]
            kh = kh * cos[b] + _rotate_half(kh) * sin[b]
            kh_all.append(kh); vh_all.append(vh)
            s = dot(qh, kh.T) * ATT_SCALE + mask[b]
            pp = jax.nn.softmax(s, axis=-1)
            heads.append(dot(pp, vh))
        ctx = jnp.concatenate(heads, axis=-1)
        x = x + dot(ctx, p["wo"]) * RES_SCALE
        xn2 = _rms_norm(x, p["ln2"])
        g = dot(xn2, p["wg"]); u = dot(xn2, p["wu"])
        act = (g * jax.nn.sigmoid(g)) * u
        x = x + dot(act, p["wd"]) * RES_SCALE
        outs.append(x); pks.append(jnp.stack(kh_all)); pvs.append(jnp.stack(vh_all))
    return jnp.stack(outs), jnp.stack(pks), jnp.stack(pvs)


if __name__ == "__main__":
    key = jax.random.PRNGKey(0)
    ks = jax.random.split(key, 12)

    hidden = jax.random.normal(ks[0], (B, S, H), jnp.float32)
    position_ids = jnp.broadcast_to(jnp.arange(S, dtype=jnp.int32), (B, S))

    # additive causal attention mask (what HF passes into the decoder layer)
    causal = jnp.tril(jnp.ones((S, S), jnp.float32))
    attention_mask = jnp.where(causal == 1.0, 0.0, -1e9)
    attention_mask = jnp.broadcast_to(attention_mask, (B, S, S))

    # RoPE tables from position_ids (glue)
    inv_freq = 1.0 / (ROPE_BASE ** (jnp.arange(0, HD, 2, dtype=jnp.float32) / HD))
    freqs = position_ids.astype(jnp.float32)[:, :, None] * inv_freq[None, None, :]
    emb = jnp.concatenate([freqs, freqs], axis=-1)          # (B, S, HD)
    cos, sin = jnp.cos(emb), jnp.sin(emb)

    init = lambda k, shape: (0.02 * jax.random.normal(k, shape, jnp.float32))
    params = {
        "ln1": jnp.ones((1, H), jnp.float32),
        "ln2": jnp.ones((1, H), jnp.float32),
        "wq": init(ks[1], (H, H)),
        "wk": init(ks[2], (H, H)),
        "wv": init(ks[3], (H, H)),
        "wo": init(ks[4], (H, H)),
        "wg": init(ks[5], (H, I)),
        "wu": init(ks[6], (H, I)),
        "wd": init(ks[7], (I, H)),
    }

    # one-time load-time prep (fused weights, masks, RoPE tables, roll probe)
    prep = jax.tree_util.tree_map(jax.block_until_ready,
                                  prepare(params, attention_mask, cos, sin))

    out, past_k, past_v = jax.block_until_ready(minicpm_block(hidden, prep))

    ref_out, ref_k, ref_v = reference_block(hidden, attention_mask, cos, sin, params)
    assert jnp.allclose(out, ref_out, atol=2e-2, rtol=2e-2)
    assert jnp.allclose(past_k.astype(jnp.float32), ref_k, atol=2e-2, rtol=2e-2)
    assert jnp.allclose(past_v.astype(jnp.float32), ref_v, atol=2e-2, rtol=2e-2)

    print("KERNEL_OK")
</pallas_src>

<mosaic_0001>
module attributes {stable_mosaic.version = 11 : i64} {
  func.func @probe(%arg0: memref<8x128xi32, #tpu.memory_space<vmem>>, %arg1: memref<8x128xi32, #tpu.memory_space<vmem>>) attributes {dimension_semantics = [], scalar_prefetch = 0 : i64, scratch_operands = 0 : i64, tpu.core_type = #tpu.core_type<tc>} {
    %c0 = arith.constant 0 : index
    %c0_0 = arith.constant 0 : index
    %0 = vector.load %arg0[%c0, %c0_0] : memref<8x128xi32, #tpu.memory_space<vmem>>, vector<8x128xi32>
    %c16_i32 = arith.constant 16 : i32
    %1 = tpu.dynamic_rotate %0 by %c16_i32 dim 1 : vector<8x128xi32>, i32 -> vector<8x128xi32>
    %c0_1 = arith.constant 0 : index
    %c0_2 = arith.constant 0 : index
    %2 = vector.load %arg1[%c0_1, %c0_2] : memref<8x128xi32, #tpu.memory_space<vmem>>, vector<8x128xi32>
    tpu.vector_store %arg1[%c0_1, %c0_2], %1 {strides = array<i32>} : memref<8x128xi32, #tpu.memory_space<vmem>>, vector<8x128xi32>,
    return
  }
}

</mosaic_0001>

<llo_original>
// kernel: tpu_custom_call.1
$region0: #{tpu_custom_call.1}
  #allocation0 [shape = 'u32[]', space=smem, size = 0x4, offset = 0x4, fixed_abs, tag = 'smem constant byte address 0x4 - core index']
  #allocation1 [shape = 'u32[144,128]{1,0:T(1,128)}', space=vmem, size = 0x12000, scoped, tag = 'internal scratch']
  %s0 = inlined_call_operand.hbm [shape: s32[8,128], index: 0, kind: input, shape index: {}]
  %s1 = inlined_call_operand.hbm [shape: s32[8,128], index: 1, kind: output, shape index: {}]
  %s2 = sld [smem:[#allocation0]]
  $region18: #{tpu_custom_call.1} parent=0
    _
  %s4 = ssub.s32 1, %s2
  %s5 = scalar_select 0, %s4, %s2
  $region1: #{tpu_custom_call.1} parent=0
    #allocation2 [shape = 'u8[4096]{0}', space=vmem, size = 0x1000, scoped, tag = 'input window, operand 0, single buffered']
    #allocation3 [shape = 's32[1]{0}', space=sflag, size = 0x4, scoped, tag = 'scoped memory for tpu_custom_call.1']
    #allocation4 [shape = 's32[1]{0}', space=sflag, size = 0x4, scoped, tag = 'scoped memory for tpu_custom_call.1']
    #allocation5 [shape = 'u8[4096]{0}', space=vmem, size = 0x1000, scoped, tag = 'output window, operand 0, single buffered']
    %6 = vsyncpa [#allocation3], 0
    %7 = vsyncpa [#allocation4], 0
    // Predicated region
    $region2: #{tpu_custom_call.1} parent=1 // pred_check
      _
    $region3: #{tpu_custom_call.1} parent=1 // pred_check_branch
      %9 = sbr.rel (0) target = $region5
    $region4: #{tpu_custom_call.1} parent=1 // pred_region
      %s11 = ssub.s32 128, 128
      %12 = vsyncadd [#allocation3], %s11
      %s14 = sshll.u32 [#allocation2], 4
      %s15 = int_to_ptr.vmem [resolvable:$true] %s14
      %17 = dma.hbm_to_vmem [thread:$0]  %s0, 128, %s15, [#allocation3]
    $region5: #{tpu_custom_call.1} parent=1 // pred_fallthru
      _
    // Predicated region
    $region6: #{tpu_custom_call.1} parent=1 // pred_check
      _
    $region7: #{tpu_custom_call.1} parent=1 // pred_check_branch
      %19 = sbr.rel (0) target = $region9
    $region8: #{tpu_custom_call.1} parent=1 // pred_region
      %20 = dma.done [#allocation3], 128
    $region9: #{tpu_custom_call.1} parent=1 // pred_fallthru
      _
    %v21 = vld [vmem:[#allocation2] sm:$0xff]
    %22 = vrot.lane.b32.xlu0 %v21, 16
    %v23 = vpop.permute.xlu0 %22
    %24 = vst [vmem:[#allocation5] sm:$0xff] %v23
    // Predicated region
    $region10: #{tpu_custom_call.1} parent=1 // pred_check
      _
    $region11: #{tpu_custom_call.1} parent=1 // pred_check_branch
      %26 = sbr.rel (0) target = $region13
    $region12: #{tpu_custom_call.1} parent=1 // pred_region
      %s28 = ssub.s32 128, 128
      %29 = vsyncadd [#allocation4], %s28
      %s31 = sshll.u32 [#allocation5], 4
      %s32 = int_to_ptr.vmem [resolvable:$true] %s31
      %34 = dma.vmem_to_hbm [thread:$0]  %s32, 128, %s1, [#allocation4]
    $region13: #{tpu_custom_call.1} parent=1 // pred_fallthru
      _
    // Predicated region
    $region14: #{tpu_custom_call.1} parent=1 // pred_check
      _
    $region15: #{tpu_custom_call.1} parent=1 // pred_check_branch
      %36 = sbr.rel (0) target = $region17
    $region16: #{tpu_custom_call.1} parent=1 // pred_region
      %37 = dma.done [#allocation4], 128
    $region17: #{tpu_custom_call.1} parent=1 // pred_fallthru
      _
    %38 = vsyncpa [#allocation3], 1
    %39 = vsyncpa [#allocation4], 1

</llo_original>
